<compile_context>
chip_gen: v5e
topology: v5e:2x2
jax: 0.10.0
libtpu: 0.0.40
codegen_flags: <defaults>
</compile_context>

<pallas_src>
import jax
import jax.numpy as jnp
from jax import lax
from jax.experimental import pallas as pl
from jax.experimental.pallas import tpu as pltpu

_LANE = 128
_SUBLANE = 8


def _round_up(n, m):
    return ((n + m - 1) // m) * m


def critic_kernel(x_ref, w1_ref, b1_ref, w2_ref, b2_ref, w3_ref, b3_ref, out_ref):
    # x stays batch-major in HBM/VMEM: (TB, nS). All activations are feature-major
    # (H on sublanes, batch on lanes) so every vector op runs on lane-dense vregs.
    x = x_ref[...]                                                     # (TB, nS)

    # Layer 1: contract the nS (lane) dims of W1 (H, nS) and x (TB, nS) -> (H, TB).
    h1 = jnp.tanh(
        lax.dot_general(
            w1_ref[...], x,
            dimension_numbers=(((1,), (1,)), ((), ())),
            preferred_element_type=jnp.float32,
        )
        + b1_ref[...]                                                  # (H, 1) bcast over lanes
    )                                                                  # (H, TB)

    # Layer 2: standard MXU form (H, H) @ (H, TB) -> (H, TB).
    h2 = jnp.tanh(
        jnp.dot(w2_ref[...], h1, preferred_element_type=jnp.float32)
        + b2_ref[...]
    )                                                                  # (H, TB)

    # Layer 3: (8, H) @ (H, TB) -> (8, TB). Rows 1..7 of w3 are zero padding so the
    # MXU sees an M=8 matmul; row 0 is the critic value. The store is an unmasked,
    # lane-dense (1, TB) slab.
    z = jnp.dot(w3_ref[...], h2, preferred_element_type=jnp.float32)   # (8, TB)
    out_ref[...] = z[0:1, :] + b3_ref[0, 0]                            # (1, TB)


def _choose_tile(B, tile_b):
    """Pick the batch-tile width. Multi-tile widths are multiples of 128 so the
    (1, tb) output blocks are lane-aligned; mid-size batches get >= 2 tiles so the
    "parallel" grid axis can be split across both TensorCores on v7x."""
    tile_b = max(_LANE, _round_up(tile_b, _LANE))
    if B <= min(256, tile_b):
        return B, 1                           # tiny batch: one full-array block
    tb = min(tile_b, _round_up(pl.cdiv(B, 2), _LANE))
    return tb, pl.cdiv(B, tb)


def _vmem_limit_bytes(tb, nS, H):
    # Budget: double-buffered x tile (lane-padded to 128 in VMEM), double-buffered
    # (1, tb) output block (sublane-padded), h1/h2/z live values, weights + slack.
    x_tile = 2 * tb * max(_round_up(nS, _LANE), _LANE) * 4
    out_tile = 2 * _SUBLANE * tb * 4
    inter = 3 * _round_up(H, _SUBLANE) * tb * 4
    est = x_tile + out_tile + inter + (1 << 20)
    return int(min(100 * 1024 * 1024, max(32 * 1024 * 1024, est * 3 // 2)))


def critic_forward(x, params, *, tile_b=8192):
    """x: (B, nS) float32 -> (B, 1) float32 critic values."""
    w1, b1, w2, b2, w3, b3 = params
    B, nS = x.shape
    H = w1.shape[0]

    tb, num_tiles = _choose_tile(B, tile_b)

    # Pad w3 (1, H) -> (8, H) with zero rows (sublane alignment only; no lane pad).
    w3_pad = jnp.pad(w3, ((0, 8 - w3.shape[0]), (0, 0)))

    param_bytes = 4 * (w1.size + b1.size + w2.size + b2.size + w3_pad.size + b3.size)
    cost = pl.CostEstimate(
        flops=2 * B * (nS * H + H * H + H),
        transcendentals=2 * B * H,
        bytes_accessed=B * nS * 4 + param_bytes + B * 4,
    )

    out = pl.pallas_call(
        critic_kernel,
        out_shape=jax.ShapeDtypeStruct((1, B), jnp.float32),
        grid=(num_tiles,),
        in_specs=[
            pl.BlockSpec((tb, nS), lambda i: (i, 0)),            # x: batch-tiled, no wrapper pad
            pl.BlockSpec(w1.shape, lambda i: (0, 0)),            # weights/biases: constant
            pl.BlockSpec(b1.shape, lambda i: (0, 0)),            #   index_map -> DMA'd once,
            pl.BlockSpec(w2.shape, lambda i: (0, 0)),            #   VMEM-resident across grid
            pl.BlockSpec(b2.shape, lambda i: (0, 0)),
            pl.BlockSpec(w3_pad.shape, lambda i: (0, 0)),
            pl.BlockSpec(memory_space=pltpu.MemorySpace.SMEM),   # b3: scalar in SMEM
        ],
        out_specs=pl.BlockSpec((1, tb), lambda i: (0, i)),       # lane-dense output slab
        compiler_params=pltpu.CompilerParams(
            dimension_semantics=("parallel",),                   # megacore split on v7x
            vmem_limit_bytes=_vmem_limit_bytes(tb, nS, H),
        ),
        cost_estimate=cost,
    )(x, w1, b1, w2, b2, w3_pad, b3)

    # (1, B) -> (B, 1): identical flat order, metadata-only relayout of B floats.
    return out.reshape(B, 1)


def init_params(key, nS, H=20):
    # PyTorch nn.Linear default init: U(-1/sqrt(fan_in), 1/sqrt(fan_in)) for W and b.
    # Weights in PyTorch (out, in) layout; biases as (out, 1) columns (feature on
    # sublanes) for the feature-major kernel.
    keys = jax.random.split(key, 6)

    def linear(kw, kb, fan_in, fan_out):
        bound = 1.0 / jnp.sqrt(jnp.float32(fan_in))
        w = jax.random.uniform(kw, (fan_out, fan_in), jnp.float32, -bound, bound)
        b = jax.random.uniform(kb, (fan_out, 1), jnp.float32, -bound, bound)
        return w, b

    w1, b1 = linear(keys[0], keys[1], nS, H)    # (H, nS), (H, 1)
    w2, b2 = linear(keys[2], keys[3], H, H)     # (H, H),  (H, 1)
    w3, b3 = linear(keys[4], keys[5], H, 1)     # (1, H),  (1, 1)
    return (w1, b1, w2, b2, w3, b3)


def critic_reference(x, params):
    w1, b1, w2, b2, w3, b3 = params
    h1 = jnp.tanh(x @ w1.T + b1.T)
    h2 = jnp.tanh(h1 @ w2.T + b2.T)
    return h2 @ w3.T + b3


if __name__ == "__main__":
    nS = 32
    key = jax.random.PRNGKey(0)
    k_x, k_x2, k_p = jax.random.split(key, 3)
    params = init_params(k_p, nS)

    # Small sanity case (single full-array tile).
    x = jax.random.normal(k_x, (8, nS), dtype=jnp.float32)
    out = jax.block_until_ready(critic_forward(x, params))
    ref = critic_reference(x, params)
    assert out.shape == (8, 1)
    # Tolerance leaves headroom for the different (mathematically equivalent)
    # feature-major contraction order on the MXU.
    assert jnp.allclose(out, ref, atol=1e-4, rtol=1e-4)

    # Multi-tile + ragged-tail case: tile_b=128 -> 2-step grid over 200 rows; the
    # second tile's OOB rows (200..255) are garbage-in / discarded-out, no pad copy.
    x2 = jax.random.normal(k_x2, (200, nS), dtype=jnp.float32)
    out2 = jax.block_until_ready(critic_forward(x2, params, tile_b=128))
    ref2 = critic_reference(x2, params)
    assert out2.shape == (200, 1)
    assert jnp.allclose(out2, ref2, atol=1e-4, rtol=1e-4)

    print("KERNEL_OK")
</pallas_src>

<mosaic_0001>
module attributes {stable_mosaic.version = 11 : i64} {
  func.func @critic_kernel(%arg0: i32, %arg1: memref<8x32xf32, #tpu.memory_space<vmem>>, %arg2: memref<20x32xf32, #tpu.memory_space<vmem>>, %arg3: memref<20x1xf32, #tpu.memory_space<vmem>>, %arg4: memref<20x20xf32, #tpu.memory_space<vmem>>, %arg5: memref<20x1xf32, #tpu.memory_space<vmem>>, %arg6: memref<8x20xf32, #tpu.memory_space<vmem>>, %arg7: memref<1x1xf32, #tpu.memory_space<smem>>, %arg8: memref<1x8xf32, #tpu.memory_space<vmem>>) attributes {dimension_semantics = [#tpu.dimension_semantics<parallel>], iteration_bounds = array<i64: 1>, scalar_prefetch = 0 : i64, scratch_operands = 0 : i64, tpu.core_type = #tpu.core_type<tc>, window_params = [{transform_indices = @transform_0, window_bounds = array<i64: 8, 32>}, {pipeline_mode = #tpu.pipeline_mode<synchronous>, transform_indices = @transform_1, window_bounds = array<i64: 20, 32>}, {pipeline_mode = #tpu.pipeline_mode<synchronous>, transform_indices = @transform_2, window_bounds = array<i64: 20, 1>}, {pipeline_mode = #tpu.pipeline_mode<synchronous>, transform_indices = @transform_3, window_bounds = array<i64: 20, 20>}, {pipeline_mode = #tpu.pipeline_mode<synchronous>, transform_indices = @transform_4, window_bounds = array<i64: 20, 1>}, {pipeline_mode = #tpu.pipeline_mode<synchronous>, transform_indices = @transform_5, window_bounds = array<i64: 8, 20>}, {transform_indices = @transform_6, window_bounds = array<i64: 1, 1>}, {transform_indices = @transform_7, window_bounds = array<i64: 1, 8>}]} {
    %c0 = arith.constant 0 : index
    %c0_0 = arith.constant 0 : index
    %0 = vector.load %arg1[%c0, %c0_0] : memref<8x32xf32, #tpu.memory_space<vmem>>, vector<8x32xf32>
    %c0_1 = arith.constant 0 : index
    %c0_2 = arith.constant 0 : index
    %1 = vector.load %arg2[%c0_1, %c0_2] : memref<20x32xf32, #tpu.memory_space<vmem>>, vector<20x32xf32>
    %cst = arith.constant dense<0.000000e+00> : vector<20x8xf32>
    %2 = tpu.matmul %1, %0, %cst {dimension_numbers = #tpu.dot_dimension_numbers<[1], [1], [0], [0], [0, 0, 1, 0], [], []>} : vector<20x32xf32>, vector<8x32xf32>, vector<20x8xf32> -> vector<20x8xf32>
    %c0_3 = arith.constant 0 : index
    %c0_4 = arith.constant 0 : index
    %3 = vector.load %arg3[%c0_3, %c0_4] : memref<20x1xf32, #tpu.memory_space<vmem>>, vector<20x1xf32>
    %4 = vector.broadcast %3 : vector<20x1xf32> to vector<20x8xf32>
    %5 = arith.addf %2, %4 : vector<20x8xf32>
    %6 = math.tanh %5 : vector<20x8xf32>
    %c0_5 = arith.constant 0 : index
    %c0_6 = arith.constant 0 : index
    %7 = vector.load %arg4[%c0_5, %c0_6] : memref<20x20xf32, #tpu.memory_space<vmem>>, vector<20x20xf32>
    %cst_7 = arith.constant dense<0.000000e+00> : vector<20x8xf32>
    %8 = tpu.matmul %7, %6, %cst_7 {dimension_numbers = #tpu.dot_dimension_numbers<[1], [0], [0], [1], [0, 0, 1, 1], [], []>} : vector<20x20xf32>, vector<20x8xf32>, vector<20x8xf32> -> vector<20x8xf32>
    %c0_8 = arith.constant 0 : index
    %c0_9 = arith.constant 0 : index
    %9 = vector.load %arg5[%c0_8, %c0_9] : memref<20x1xf32, #tpu.memory_space<vmem>>, vector<20x1xf32>
    %10 = vector.broadcast %9 : vector<20x1xf32> to vector<20x8xf32>
    %11 = arith.addf %8, %10 : vector<20x8xf32>
    %12 = math.tanh %11 : vector<20x8xf32>
    %c0_10 = arith.constant 0 : index
    %c0_11 = arith.constant 0 : index
    %13 = vector.load %arg6[%c0_10, %c0_11] : memref<8x20xf32, #tpu.memory_space<vmem>>, vector<8x20xf32>
    %cst_12 = arith.constant dense<0.000000e+00> : vector<8x8xf32>
    %14 = tpu.matmul %13, %12, %cst_12 {dimension_numbers = #tpu.dot_dimension_numbers<[1], [0], [0], [1], [0, 0, 1, 1], [], []>} : vector<8x20xf32>, vector<20x8xf32>, vector<8x8xf32> -> vector<8x8xf32>
    %15 = vector.extract_strided_slice %14 {offsets = [0, 0], sizes = [1, 8], strides = [1, 1]} : vector<8x8xf32> to vector<1x8xf32>
    %c0_13 = arith.constant 0 : index
    %c0_14 = arith.constant 0 : index
    %16 = memref.load %arg7[%c0_13, %c0_14] : memref<1x1xf32, #tpu.memory_space<smem>>
    %17 = vector.broadcast %16 : f32 to vector<1x8xf32>
    %18 = arith.addf %15, %17 : vector<1x8xf32>
    %c0_15 = arith.constant 0 : index
    %c0_16 = arith.constant 0 : index
    %19 = vector.load %arg8[%c0_15, %c0_16] : memref<1x8xf32, #tpu.memory_space<vmem>>, vector<1x8xf32>
    tpu.vector_store %arg8[%c0_15, %c0_16], %18 {strides = array<i32>} : memref<1x8xf32, #tpu.memory_space<vmem>>, vector<1x8xf32>,
    return
  }
  func.func @transform_0(%arg0: i32) -> (i32, i32) {
    %c0_i32 = arith.constant 0 : i32
    %c0_i32_0 = arith.constant 0 : i32
    return %arg0, %c0_i32 : i32, i32
  }
  func.func @transform_1(%arg0: i32) -> (i32, i32) {
    %c0_i32 = arith.constant 0 : i32
    %c0_i32_0 = arith.constant 0 : i32
    %c0_i32_1 = arith.constant 0 : i32
    return %c0_i32, %c0_i32_0 : i32, i32
  }
  func.func @transform_2(%arg0: i32) -> (i32, i32) {
    %c0_i32 = arith.constant 0 : i32
    %c0_i32_0 = arith.constant 0 : i32
    %c0_i32_1 = arith.constant 0 : i32
    return %c0_i32, %c0_i32_0 : i32, i32
  }
  func.func @transform_3(%arg0: i32) -> (i32, i32) {
    %c0_i32 = arith.constant 0 : i32
    %c0_i32_0 = arith.constant 0 : i32
    %c0_i32_1 = arith.constant 0 : i32
    return %c0_i32, %c0_i32_0 : i32, i32
  }
  func.func @transform_4(%arg0: i32) -> (i32, i32) {
    %c0_i32 = arith.constant 0 : i32
    %c0_i32_0 = arith.constant 0 : i32
    %c0_i32_1 = arith.constant 0 : i32
    return %c0_i32, %c0_i32_0 : i32, i32
  }
  func.func @transform_5(%arg0: i32) -> (i32, i32) {
    %c0_i32 = arith.constant 0 : i32
    %c0_i32_0 = arith.constant 0 : i32
    %c0_i32_1 = arith.constant 0 : i32
    return %c0_i32, %c0_i32_0 : i32, i32
  }
  func.func @transform_6(%arg0: i32) -> (i32, i32) {
    %c0_i32 = arith.constant 0 : i32
    %c0_i32_0 = arith.constant 0 : i32
    %c0_i32_1 = arith.constant 0 : i32
    return %c0_i32, %c0_i32_0 : i32, i32
  }
  func.func @transform_7(%arg0: i32) -> (i32, i32) {
    %c0_i32 = arith.constant 0 : i32
    %c0_i32_0 = arith.constant 0 : i32
    return %c0_i32, %arg0 : i32, i32
  }
}

</mosaic_0001>

<llo_original>
// kernel: tpu_custom_call.1
$region0: #{tpu_custom_call.1}
  #allocation0 [shape = 'u32[]', space=smem, size = 0x4, offset = 0x4, fixed_abs, tag = 'smem constant byte address 0x4 - core index']
  #allocation1 [shape = 'u32[72,128]{1,0:T(1,128)}', space=vmem, size = 0x9000, scoped, tag = 'internal scratch']
  #allocation2 [shape = 'f32[1,1]{1,0:T(1,128)S(6)}', space=smem, size = 0x200, scoped, tag = 'scoped memory for tpu_custom_call.1']
  %s0 = inlined_call_operand.hbm [shape: f32[8,32], index: 0, kind: input, shape index: {}]
  %s1 = inlined_call_operand.vmem [shape: f32[20,32], index: 1, kind: input, shape index: {}]
  %s2 = inlined_call_operand.vmem [shape: f32[20,1], index: 2, kind: input, shape index: {}]
  %s3 = inlined_call_operand.vmem [shape: f32[20,20], index: 3, kind: input, shape index: {}]
  %s4 = inlined_call_operand.vmem [shape: f32[20,1], index: 4, kind: input, shape index: {}]
  %s5 = inlined_call_operand.vmem [shape: f32[8,20], index: 5, kind: input, shape index: {}]
  %s6 = inlined_call_operand.<no memory space> [shape: f32[1,1], index: 6, kind: input, shape index: {}]
  %s7 = inlined_call_operand.hbm [shape: f32[1,8], index: 7, kind: output, shape index: {}]
  %s8 = sld [smem:[#allocation0]]
  $region42: #{tpu_custom_call.1} parent=0
    _
  %s10 = ssub.s32 1, %s8
  %s11 = scalar_select 0, %s10, %s8
  %12 = sst [smem:[#allocation2]] %s6
  $region1: #{tpu_custom_call.1} parent=0
    #allocation3 [shape = 'u8[4096]{0}', space=vmem, size = 0x1000, scoped, tag = 'input window, operand 0, single buffered']
    #allocation4 [shape = 's32[1]{0}', space=sflag, size = 0x4, scoped, tag = 'scoped memory for tpu_custom_call.1']
    #allocation5 [shape = 's32[1]{0}', space=sflag, size = 0x4, scoped, tag = 'scoped memory for tpu_custom_call.1']
    #allocation6 [shape = 'u8[512]{0}', space=vmem, size = 0x400, scoped, tag = 'output window, operand 0, single buffered']
    %13 = vsyncpa [#allocation4], 0
    %14 = vsyncpa [#allocation5], 0
    // Predicated region
    $region2: #{tpu_custom_call.1} parent=1 // pred_check
      _
    $region3: #{tpu_custom_call.1} parent=1 // pred_check_branch
      %16 = sbr.rel (0) target = $region5
    $region4: #{tpu_custom_call.1} parent=1 // pred_region
      %18 = vsyncadd [#allocation4], 0
      %s20 = sshll.u32 %s0, 4
      %s21 = int_to_ptr.hbm [resolvable:$true] %s20
      %s22 = sshll.u32 [#allocation3], 4
      %s23 = int_to_ptr.vmem [resolvable:$true] %s22
      %25 = dma.hbm_to_vmem [thread:$0]  %s21, 128, %s23, [#allocation4]
    $region5: #{tpu_custom_call.1} parent=1 // pred_fallthru
      _
    // Predicated region
    $region6: #{tpu_custom_call.1} parent=1 // pred_check
      _
    $region7: #{tpu_custom_call.1} parent=1 // pred_check_branch
      %27 = sbr.rel (0) target = $region9
    $region8: #{tpu_custom_call.1} parent=1 // pred_region
      _
    $region9: #{tpu_custom_call.1} parent=1 // pred_fallthru
      _
    // Predicated region
    $region10: #{tpu_custom_call.1} parent=1 // pred_check
      _
    $region11: #{tpu_custom_call.1} parent=1 // pred_check_branch
      %29 = sbr.rel (0) target = $region13
    $region12: #{tpu_custom_call.1} parent=1 // pred_region
      _
    $region13: #{tpu_custom_call.1} parent=1 // pred_fallthru
      _
    // Predicated region
    $region14: #{tpu_custom_call.1} parent=1 // pred_check
      _
    $region15: #{tpu_custom_call.1} parent=1 // pred_check_branch
      %31 = sbr.rel (0) target = $region17
    $region16: #{tpu_custom_call.1} parent=1 // pred_region
      _
    $region17: #{tpu_custom_call.1} parent=1 // pred_fallthru
      _
    // Predicated region
    $region18: #{tpu_custom_call.1} parent=1 // pred_check
      _
    $region19: #{tpu_custom_call.1} parent=1 // pred_check_branch
      %33 = sbr.rel (0) target = $region21
    $region20: #{tpu_custom_call.1} parent=1 // pred_region
      _
    $region21: #{tpu_custom_call.1} parent=1 // pred_fallthru
      _
    // Predicated region
    $region22: #{tpu_custom_call.1} parent=1 // pred_check
      _
    $region23: #{tpu_custom_call.1} parent=1 // pred_check_branch
      %35 = sbr.rel (0) target = $region25
    $region24: #{tpu_custom_call.1} parent=1 // pred_region
      _
    $region25: #{tpu_custom_call.1} parent=1 // pred_fallthru
      _
    // Predicated region
    $region26: #{tpu_custom_call.1} parent=1 // pred_check
      _
    $region27: #{tpu_custom_call.1} parent=1 // pred_check_branch
      %37 = sbr.rel (0) target = $region29
    $region28: #{tpu_custom_call.1} parent=1 // pred_region
      _
    $region29: #{tpu_custom_call.1} parent=1 // pred_fallthru
      _
    // Predicated region
    $region30: #{tpu_custom_call.1} parent=1 // pred_check
      _
    $region31: #{tpu_custom_call.1} parent=1 // pred_check_branch
      %39 = sbr.rel (0) target = $region33
    $region32: #{tpu_custom_call.1} parent=1 // pred_region
      %41 = dma.done [#allocation4], 128
    $region33: #{tpu_custom_call.1} parent=1 // pred_fallthru
      _
    %v42 = vld [vmem:[#allocation3] sm:$0xff]
    %v43 = vld [vmem:[%s1] sm:$0xff]
    %v44 = vld [vmem:[%s1 + $0x8] sm:$0xff]
    %v45 = vld [vmem:[%s1 + $0x10] sm:$0xf]
    %v46 = vld [vmem:[%s2] sm:$0xff]
    %v47 = vld [vmem:[%s2 + $0x8] sm:$0xff]
    %v48 = vld [vmem:[%s2 + $0x10] sm:$0xf]
    %50 = vset.pattern.permute.xlu0 0
    %51 = vperm.xlu0 %50, %v46
    %v52 = vpop.permute.xlu0 %51
    %55 = vset.pattern.permute.xlu0 0
    %56 = vperm.xlu0 %55, %v47
    %v57 = vpop.permute.xlu0 %56
    %60 = vset.pattern.permute.xlu0 0
    %61 = vperm.xlu0 %60, %v48
    %v62 = vpop.permute.xlu0 %61
    %vm64 = vcmask 261120
    %v66 = vsel %vm64, %v43, 0
    %v69 = vsel %vm64, %v44, 0
    %v72 = vsel %vm64, %v45, 0
    %v75 = vsel %vm64, %v42, 0
    %77 = vmatpush.xpose.msra.mxu0 0.0
    %78 = vmatpush.xpose.msra.mxu0 0.0
    %79 = vmatpush.xpose.msra.mxu0 0.0
    %80 = vmatpush.xpose.msra.mxu0 0.0
    %81 = vmatpush.xpose.msra.mxu0 0.0
    %82 = vmatpush.xpose.msra.mxu0 0.0
    %83 = vmatpush.xpose.msra.mxu0 0.0
    %84 = vmatpush.xpose.msra.mxu0 0.0
    %85 = vmatpush.xpose.msra.mxu0 0.0
    %86 = vmatpush.xpose.msra.mxu0 0.0
    %87 = vmatpush.xpose.msra.mxu0 0.0
    %88 = vmatpush.xpose.msra.mxu0 0.0
    %89 = vmatpush.xpose.msra.mxu0 0.0
    %90 = vmatpush.xpose.msra.mxu0 0.0
    %91 = vmatpush.xpose.msra.mxu0 0.0
    %92 = vmatpush.xpose.msra.mxu0 %v75
    %93 = vmatmul.f32.gmra.mxu0 %v66
    %v94 = vpop.f32.mrf.mxu0
    %v95 = vadd.f32 %v52, %v94
    %96 = vmatmul.f32.gmra.mxu0 %v69
    %v97 = vpop.f32.mrf.mxu0
    %v98 = vadd.f32 %v57, %v97
    %99 = vmatmul.f32.gmra.mxu0 %v72
    %v100 = vpop.f32.mrf.mxu0
    %v101 = vadd.f32 %v62, %v100
    %102 = vdwg.mxu0
    %v103 = vtanh.pop %v95
    %v104 = vtanh.pop %v98
    %v105 = vtanh.pop %v101
    %v106 = vld [vmem:[%s3] sm:$0xff]
    %v107 = vld [vmem:[%s3 + $0x8] sm:$0xff]
    %v108 = vld [vmem:[%s3 + $0x10] sm:$0xf]
    %v109 = vld [vmem:[%s4] sm:$0xff]
    %v110 = vld [vmem:[%s4 + $0x8] sm:$0xff]
    %v111 = vld [vmem:[%s4 + $0x10] sm:$0xf]
    %113 = vset.pattern.permute.xlu0 0
    %114 = vperm.xlu0 %113, %v109
    %v115 = vpop.permute.xlu0 %114
    %118 = vset.pattern.permute.xlu0 0
    %119 = vperm.xlu0 %118, %v110
    %v120 = vpop.permute.xlu0 %119
    %123 = vset.pattern.permute.xlu0 0
    %124 = vperm.xlu0 %123, %v111
    %v125 = vpop.permute.xlu0 %124
    %vm127 = vcmask 162816
    %v129 = vsel %vm127, %v106, 0
    %v132 = vsel %vm127, %v107, 0
    %v135 = vsel %vm127, %v108, 0
    %vm137 = vcmask 1043456
    %v139 = vsel %vm137, %v105, 0
    %141 = vmatpush.msra.mxu0 0.0
    %142 = vmatpush.msra.mxu0 0.0
    %143 = vmatpush.msra.mxu0 0.0
    %144 = vmatpush.msra.mxu0 0.0
    %145 = vmatpush.msra.mxu0 0.0
    %146 = vmatpush.msra.mxu0 0.0
    %147 = vmatpush.msra.mxu0 0.0
    %148 = vmatpush.msra.mxu0 0.0
    %149 = vmatpush.msra.mxu0 0.0
    %150 = vmatpush.msra.mxu0 0.0
    %151 = vmatpush.msra.mxu0 0.0
    %152 = vmatpush.msra.mxu0 0.0
    %153 = vmatpush.msra.mxu0 0.0
    %154 = vmatpush.msra.mxu0 %v139
    %155 = vmatpush.msra.mxu0 %v104
    %156 = vmatpush.msra.mxu0 %v103
    %157 = vmatmul.f32.gmra.mxu0 %v129
    %v158 = vpop.f32.mrf.mxu0
    %v159 = vadd.f32 %v115, %v158
    %160 = vmatmul.f32.gmra.mxu0 %v132
    %v161 = vpop.f32.mrf.mxu0
    %v162 = vadd.f32 %v120, %v161
    %163 = vmatmul.f32.gmra.mxu0 %v135
    %v164 = vpop.f32.mrf.mxu0
    %v165 = vadd.f32 %v125, %v164
    %166 = vdwg.mxu0
    %v167 = vtanh.pop %v159
    %v168 = vtanh.pop %v162
    %v169 = vtanh.pop %v165
    %v170 = vld [vmem:[%s5] sm:$0xff]
    %v172 = vsel %vm127, %v170, 0
    %v175 = vsel %vm137, %v169, 0
    %177 = vmatpush.msra.mxu0 0.0
    %178 = vmatpush.msra.mxu0 0.0
    %179 = vmatpush.msra.mxu0 0.0
    %180 = vmatpush.msra.mxu0 0.0
    %181 = vmatpush.msra.mxu0 0.0
    %182 = vmatpush.msra.mxu0 0.0
    %183 = vmatpush.msra.mxu0 0.0
    %184 = vmatpush.msra.mxu0 0.0
    %185 = vmatpush.msra.mxu0 0.0
    %186 = vmatpush.msra.mxu0 0.0
    %187 = vmatpush.msra.mxu0 0.0
    %188 = vmatpush.msra.mxu0 0.0
    %189 = vmatpush.msra.mxu0 0.0
    %190 = vmatpush.msra.mxu0 %v175
    %191 = vmatpush.msra.mxu0 %v168
    %192 = vmatpush.msra.mxu0 %v167
    %193 = vmatmul.f32.gmra.mxu0 %v172
    %v194 = vpop.f32.mrf.mxu0
    %v195 = vadd.f32 0.0, %v194
    %196 = vdwg.mxu0
    %s197 = sld [smem:[#allocation2]]
    %v198 = vstv %s197
    %v199 = vadd.f32 %v195, %v198
    %vm200 = vcmask 57344
    %201 = vst.msk [vmem:[#allocation6] sm:$0x1] %vm200, %v199
    // Predicated region
    $region34: #{tpu_custom_call.1} parent=1 // pred_check
      _
    $region35: #{tpu_custom_call.1} parent=1 // pred_check_branch
      %203 = sbr.rel (0) target = $region37
    $region36: #{tpu_custom_call.1} parent=1 // pred_region
      %205 = vsyncadd [#allocation5], 0
      %s207 = sshll.u32 [#allocation6], 4
      %s208 = int_to_ptr.vmem [resolvable:$true] %s207
      %s209 = sshll.u32 %s7, 4
      %s210 = int_to_ptr.hbm [resolvable:$true] %s209
      %212 = dma.vmem_to_hbm [thread:$0]  %s208, 16, %s210, [#allocation5]
    $region37: #{tpu_custom_call.1} parent=1 // pred_fallthru
      _
    // Predicated region
    $region38: #{tpu_custom_call.1} parent=1 // pred_check
      _
    $region39: #{tpu_custom_call.1} parent=1 // pred_check_branch
      %214 = sbr.rel (0) target = $region41
    $region40: #{tpu_custom_call.1} parent=1 // pred_region
      %216 = dma.done [#allocation5], 16
    $region41: #{tpu_custom_call.1} parent=1 // pred_fallthru
      _
    %217 = vsyncpa [#allocation4], 1
    %218 = vsyncpa [#allocation5], 1

</llo_original>
